<compile_context>
chip_gen: v7x
topology: tpu7x:2x2x1
jax: 0.10.0
libtpu: 0.0.40
codegen_flags: <defaults>
</compile_context>

<pallas_src>
import functools

import jax
import jax.numpy as jnp
import numpy as np
from jax.experimental import pallas as pl
from jax.experimental.pallas import tpu as pltpu


# -----------------------------------------------------------------------------
# Pallas kernel
# -----------------------------------------------------------------------------
def _state_action_lstm_kernel(num_layers, hidden, mxu_dtype, *refs):
    # inputs:
    #   0: action (T, A)            3: c0 (num_layers, H)
    #   1: latent (T, L)            4: w_ih_a_t (A, 4H)   layer-0 input weight, action rows
    #   2: h0 (num_layers, H)       5: w_ih_l_t (L, 4H)   layer-0 input weight, latent rows
    #   6: w_hh0_t (H, 4H)          7: b0 (1, 4H)
    #   then per layer l >= 1: w_stack (2H, 4H) = [W_ih; W_hh]^T, b (1, 4H)
    # outputs: outs_pad (T, H_pad), h_n (num_layers, H), c_n (num_layers, H)
    # scratch: g0 (T, 4H) f32 -- precomputed layer-0 input gates.
    n_extra = 2 * (num_layers - 1)
    (act_ref, lat_ref, h0_ref, c0_ref,
     w_ih_a_ref, w_ih_l_ref, w_hh0_ref, b0_ref) = refs[:8]
    stacked_refs = refs[8:8 + n_extra]
    outs_ref, h_out_ref, c_out_ref, g0_scratch = refs[8 + n_extra:]

    H = hidden
    seq = act_ref.shape[0]
    hidden_pad = outs_ref.shape[1]
    lane_pad = hidden_pad - H

    # ---- layer-0 input projection for ALL timesteps: one batched MXU matmul --------------
    # (torch.cat([action, latent]) @ W_ih0 == action @ W_ih0[:A] + latent @ W_ih0[A:])
    a = act_ref[...].astype(mxu_dtype)
    x = lat_ref[...].astype(mxu_dtype)
    wa = w_ih_a_ref[...].astype(mxu_dtype)
    wl = w_ih_l_ref[...].astype(mxu_dtype)
    g0_scratch[...] = (
        jnp.dot(a, wa, preferred_element_type=jnp.float32)
        + jnp.dot(x, wl, preferred_element_type=jnp.float32)
        + b0_ref[...]
    )  # (T, 4H), float32

    # ---- hoist all recurrent weights out of the time loop (one-time vld) -----------------
    w_hh0 = w_hh0_ref[...]                                       # (H, 4H)
    stacked = [(stacked_refs[2 * l][...], stacked_refs[2 * l + 1][...])
               for l in range(num_layers - 1)]                   # [(2H,4H), (1,4H)]

    h_init = tuple(h0_ref[l:l + 1, :] for l in range(num_layers))  # each (1, H)
    c_init = tuple(c0_ref[l:l + 1, :] for l in range(num_layers))

    # hoisted constant for lane-dense output rows
    zeros_pad = jnp.zeros((1, lane_pad), jnp.float32) if lane_pad > 0 else None

    def cell(gates, c_prev):
        # gate columns permuted offline to [i, f, o, g] -> one contiguous sigmoid, one tanh
        sig = jax.nn.sigmoid(gates[:, 0:3 * H])
        i_g = sig[:, 0 * H:1 * H]
        f_g = sig[:, 1 * H:2 * H]
        o_g = sig[:, 2 * H:3 * H]
        g_g = jnp.tanh(gates[:, 3 * H:4 * H])
        c_new = f_g * c_prev + i_g * g_g
        h_new = o_g * jnp.tanh(c_new)
        return h_new, c_new

    def body(t, carry):
        hs, cs = carry
        new_h, new_c = [], []

        # layer 0: input projection already precomputed -> only the recurrent matvec remains
        gates0 = (g0_scratch[pl.ds(t, 1), :]
                  + jnp.dot(hs[0], w_hh0, preferred_element_type=jnp.float32))
        h_new, c_new = cell(gates0, cs[0])
        new_h.append(h_new)
        new_c.append(c_new)
        x_in = h_new

        # layers >= 1: single stacked matmul per cell
        for l in range(1, num_layers):
            w_stack, b = stacked[l - 1]
            x_cat = jnp.concatenate([x_in, hs[l]], axis=-1)      # (1, 2H)
            gates = jnp.dot(x_cat, w_stack, preferred_element_type=jnp.float32) + b
            h_new, c_new = cell(gates, cs[l])
            new_h.append(h_new)
            new_c.append(c_new)
            x_in = h_new

        # lane-dense per-step store (full 128-lane rows; wrapper slices [:, :H])
        row = x_in if zeros_pad is None else jnp.concatenate([x_in, zeros_pad], axis=-1)
        outs_ref[pl.ds(t, 1), :] = row
        return tuple(new_h), tuple(new_c)

    hs_f, cs_f = jax.lax.fori_loop(0, seq, body, (h_init, c_init))

    for l in range(num_layers):
        h_out_ref[l:l + 1, :] = hs_f[l]
        c_out_ref[l:l + 1, :] = cs_f[l]


# -----------------------------------------------------------------------------
# Wrapper
# -----------------------------------------------------------------------------
def state_action_lstm_forward(action, latent, kparams, h0, c0, *, mxu_dtype=jnp.float32):
    """action: (T, A), latent: (T, L) f32.  Returns (outs (T, H), (h_n, c_n))."""
    action = action.astype(jnp.float32)
    latent = latent.astype(jnp.float32)
    T = action.shape[0]
    num_layers, H = h0.shape
    H_pad = max(((H + 127) // 128) * 128, 128)   # lane-dense outs buffer

    inputs = [action, latent, h0, c0,
              kparams["w_ih_a_t"], kparams["w_ih_l_t"],
              kparams["w_hh0_t"], kparams["b0"]]
    for lp in kparams["stacked"]:
        inputs += [lp["w_stack"], lp["b"]]

    vmem = functools.partial(pl.BlockSpec, memory_space=pltpu.MemorySpace.VMEM)
    out_shape = (
        jax.ShapeDtypeStruct((T, H_pad), jnp.float32),            # outs (padded lanes)
        jax.ShapeDtypeStruct((num_layers, H), jnp.float32),       # h_n
        jax.ShapeDtypeStruct((num_layers, H), jnp.float32),       # c_n
    )
    kernel = functools.partial(_state_action_lstm_kernel, num_layers, H, mxu_dtype)
    outs_pad, h_n, c_n = pl.pallas_call(
        kernel,
        out_shape=out_shape,
        in_specs=[vmem() for _ in inputs],
        out_specs=tuple(vmem() for _ in out_shape),
        scratch_shapes=[pltpu.VMEM((T, 4 * H), jnp.float32)],     # precomputed layer-0 gates
        compiler_params=pltpu.CompilerParams(vmem_limit_bytes=32 * 1024 * 1024),
    )(*inputs)

    return outs_pad[:, :H], (h_n, c_n)


# -----------------------------------------------------------------------------
# Parameter construction (mirrors nn.LSTM init) + packing into kernel layout
# -----------------------------------------------------------------------------
def init_lstm_params(key, action_size, latent_size, hidden, num_layers):
    """Raw PyTorch-layout LSTM params (gate order i, f, g, o)."""
    k = 1.0 / np.sqrt(hidden)
    in0 = action_size + latent_size
    keys = jax.random.split(key, 4 * num_layers)
    layers = []
    for l in range(num_layers):
        in_l = in0 if l == 0 else hidden
        kk = keys[4 * l:4 * l + 4]
        layers.append({
            "w_ih": jax.random.uniform(kk[0], (4 * hidden, in_l), jnp.float32, -k, k),
            "w_hh": jax.random.uniform(kk[1], (4 * hidden, hidden), jnp.float32, -k, k),
            "b_ih": jax.random.uniform(kk[2], (4 * hidden,), jnp.float32, -k, k),
            "b_hh": jax.random.uniform(kk[3], (4 * hidden,), jnp.float32, -k, k),
        })
    return {"layers": layers}


def pack_kernel_params(raw, action_size, hidden):
    """Permute gates to [i, f, o, g], transpose, split layer-0 input weight at the
    action/latent boundary (folds torch.cat into the matmul) and stack [W_ih; W_hh]
    for layers >= 1."""
    H = hidden
    perm = np.concatenate([np.arange(0, H), np.arange(H, 2 * H),
                           np.arange(3 * H, 4 * H), np.arange(2 * H, 3 * H)])  # i,f,o,g

    def prows(w):
        return w[perm, :]

    def pvec(b):
        return b[perm]

    layers = raw["layers"]
    l0 = layers[0]
    w_ih0_t = prows(l0["w_ih"]).T                                  # (A+L, 4H)
    packed = {
        "w_ih_a_t": w_ih0_t[:action_size, :],                      # (A, 4H)
        "w_ih_l_t": w_ih0_t[action_size:, :],                      # (L, 4H)
        "w_hh0_t": prows(l0["w_hh"]).T,                            # (H, 4H)
        "b0": pvec(l0["b_ih"] + l0["b_hh"]).reshape(1, -1),        # (1, 4H)
        "stacked": [],
    }
    for l in range(1, len(layers)):
        lp = layers[l]
        w_ih_t = prows(lp["w_ih"]).T                               # (H, 4H)
        w_hh_t = prows(lp["w_hh"]).T                               # (H, 4H)
        packed["stacked"].append({
            "w_stack": jnp.concatenate([w_ih_t, w_hh_t], axis=0),  # (2H, 4H)
            "b": pvec(lp["b_ih"] + lp["b_hh"]).reshape(1, -1),     # (1, 4H)
        })
    return packed


# -----------------------------------------------------------------------------
# Pure-JAX reference (PyTorch LSTM math, original i,f,g,o gate order, raw weights)
# -----------------------------------------------------------------------------
def reference_forward(action, latent, raw, h0, c0):
    x = jnp.concatenate([action, latent], axis=-1).astype(jnp.float32)
    T = x.shape[0]
    num_layers, H = h0.shape
    h = [h0[l] for l in range(num_layers)]
    c = [c0[l] for l in range(num_layers)]
    outs = []
    for t in range(T):
        xt = x[t]
        for l in range(num_layers):
            lp = raw["layers"][l]
            g = lp["w_ih"] @ xt + lp["w_hh"] @ h[l] + lp["b_ih"] + lp["b_hh"]
            i_g = jax.nn.sigmoid(g[0 * H:1 * H])
            f_g = jax.nn.sigmoid(g[1 * H:2 * H])
            g_g = jnp.tanh(g[2 * H:3 * H])
            o_g = jax.nn.sigmoid(g[3 * H:4 * H])
            c[l] = f_g * c[l] + i_g * g_g
            h[l] = o_g * jnp.tanh(c[l])
            xt = h[l]
        outs.append(xt)
    return jnp.stack(outs, axis=0), (jnp.stack(h, axis=0), jnp.stack(c, axis=0))


if __name__ == "__main__":
    # Small shapes implied by StateActionLSTM.forward:
    #   seq T = 8, action_size = 8, latent_size = 32, hidden = 32, num_layers = 2
    T, A, L, H, NL = 8, 8, 32, 32, 2

    root = jax.random.PRNGKey(0)
    k_a, k_l, k_p, k_h, k_c = jax.random.split(root, 5)

    action = jax.random.normal(k_a, (T, A), jnp.float32)
    latent = jax.random.normal(k_l, (T, L), jnp.float32)
    raw = init_lstm_params(k_p, A, L, H, NL)
    packed = pack_kernel_params(raw, A, H)
    # init_hs(): h_0, c_0 ~ randn((num_layers, hidden_size))
    h0 = jax.random.normal(k_h, (NL, H), jnp.float32)
    c0 = jax.random.normal(k_c, (NL, H), jnp.float32)

    # f32 MXU path (works on all generations)
    outs, (h_n, c_n) = state_action_lstm_forward(action, latent, packed, h0, c0)
    jax.block_until_ready(outs)

    ref_outs, (ref_h, ref_c) = reference_forward(action, latent, raw, h0, c0)
    assert outs.shape == (T, H), outs.shape
    np.testing.assert_allclose(np.asarray(outs), np.asarray(ref_outs), rtol=1e-5, atol=1e-5)
    np.testing.assert_allclose(np.asarray(h_n), np.asarray(ref_h), rtol=1e-5, atol=1e-5)
    np.testing.assert_allclose(np.asarray(c_n), np.asarray(ref_c), rtol=1e-5, atol=1e-5)

    # bf16-operand / f32-accumulate MXU path for the batched layer-0 projection (v6e/v7x);
    # element-wise gate math and h/c state remain f32 (v5e-safe).
    outs_bf16, _ = state_action_lstm_forward(action, latent, packed, h0, c0,
                                             mxu_dtype=jnp.bfloat16)
    jax.block_until_ready(outs_bf16)
    np.testing.assert_allclose(np.asarray(outs_bf16), np.asarray(ref_outs),
                               rtol=5e-2, atol=5e-2)

    # TODO(synk): encode()/decode() rely on an externally supplied frozen VAE
    # (reparameterize / recon); they are not part of forward() and are not modeled here.
    print("KERNEL_OK")
</pallas_src>

<mosaic_0001>
module attributes {stable_mosaic.version = 11 : i64} {
  func.func @_state_action_lstm_kernel(%arg0: memref<8x8xf32, #tpu.memory_space<vmem>>, %arg1: memref<8x32xf32, #tpu.memory_space<vmem>>, %arg2: memref<2x32xf32, #tpu.memory_space<vmem>>, %arg3: memref<2x32xf32, #tpu.memory_space<vmem>>, %arg4: memref<8x128xf32, #tpu.memory_space<vmem>>, %arg5: memref<32x128xf32, #tpu.memory_space<vmem>>, %arg6: memref<32x128xf32, #tpu.memory_space<vmem>>, %arg7: memref<1x128xf32, #tpu.memory_space<vmem>>, %arg8: memref<64x128xf32, #tpu.memory_space<vmem>>, %arg9: memref<1x128xf32, #tpu.memory_space<vmem>>, %arg10: memref<8x128xf32, #tpu.memory_space<vmem>>, %arg11: memref<2x32xf32, #tpu.memory_space<vmem>>, %arg12: memref<2x32xf32, #tpu.memory_space<vmem>>, %arg13: memref<8x128xf32, #tpu.memory_space<vmem>>) attributes {dimension_semantics = [], scalar_prefetch = 0 : i64, scratch_operands = 1 : i64, tpu.core_type = #tpu.core_type<tc>} {
    %c0 = arith.constant 0 : index
    %c0_0 = arith.constant 0 : index
    %0 = vector.load %arg0[%c0, %c0_0] : memref<8x8xf32, #tpu.memory_space<vmem>>, vector<8x8xf32>
    %c0_1 = arith.constant 0 : index
    %c0_2 = arith.constant 0 : index
    %1 = vector.load %arg1[%c0_1, %c0_2] : memref<8x32xf32, #tpu.memory_space<vmem>>, vector<8x32xf32>
    %c0_3 = arith.constant 0 : index
    %c0_4 = arith.constant 0 : index
    %2 = vector.load %arg4[%c0_3, %c0_4] : memref<8x128xf32, #tpu.memory_space<vmem>>, vector<8x128xf32>
    %c0_5 = arith.constant 0 : index
    %c0_6 = arith.constant 0 : index
    %3 = vector.load %arg5[%c0_5, %c0_6] : memref<32x128xf32, #tpu.memory_space<vmem>>, vector<32x128xf32>
    %cst = arith.constant dense<0.000000e+00> : vector<8x128xf32>
    %4 = tpu.matmul %0, %2, %cst {dimension_numbers = #tpu.dot_dimension_numbers<[1], [0], [0], [1], [0, 0, 1, 1], [], []>} : vector<8x8xf32>, vector<8x128xf32>, vector<8x128xf32> -> vector<8x128xf32>
    %cst_7 = arith.constant dense<0.000000e+00> : vector<8x128xf32>
    %5 = tpu.matmul %1, %3, %cst_7 {dimension_numbers = #tpu.dot_dimension_numbers<[1], [0], [0], [1], [0, 0, 1, 1], [], []>} : vector<8x32xf32>, vector<32x128xf32>, vector<8x128xf32> -> vector<8x128xf32>
    %6 = arith.addf %4, %5 : vector<8x128xf32>
    %c0_8 = arith.constant 0 : index
    %c0_9 = arith.constant 0 : index
    %7 = vector.load %arg7[%c0_8, %c0_9] : memref<1x128xf32, #tpu.memory_space<vmem>>, vector<1x128xf32>
    %8 = vector.broadcast %7 : vector<1x128xf32> to vector<8x128xf32>
    %9 = arith.addf %6, %8 : vector<8x128xf32>
    %c0_10 = arith.constant 0 : index
    %c0_11 = arith.constant 0 : index
    %10 = vector.load %arg13[%c0_10, %c0_11] : memref<8x128xf32, #tpu.memory_space<vmem>>, vector<8x128xf32>
    tpu.vector_store %arg13[%c0_10, %c0_11], %9 {strides = array<i32>} : memref<8x128xf32, #tpu.memory_space<vmem>>, vector<8x128xf32>,
    %c0_12 = arith.constant 0 : index
    %c0_13 = arith.constant 0 : index
    %11 = vector.load %arg6[%c0_12, %c0_13] : memref<32x128xf32, #tpu.memory_space<vmem>>, vector<32x128xf32>
    %c0_14 = arith.constant 0 : index
    %c0_15 = arith.constant 0 : index
    %12 = vector.load %arg8[%c0_14, %c0_15] : memref<64x128xf32, #tpu.memory_space<vmem>>, vector<64x128xf32>
    %c0_16 = arith.constant 0 : index
    %c0_17 = arith.constant 0 : index
    %13 = vector.load %arg9[%c0_16, %c0_17] : memref<1x128xf32, #tpu.memory_space<vmem>>, vector<1x128xf32>
    %c0_18 = arith.constant 0 : index
    %c0_19 = arith.constant 0 : index
    %14 = vector.load %arg2[%c0_18, %c0_19] : memref<2x32xf32, #tpu.memory_space<vmem>>, vector<1x32xf32>
    %c1 = arith.constant 1 : index
    %c0_20 = arith.constant 0 : index
    %15 = vector.load %arg2[%c1, %c0_20] : memref<2x32xf32, #tpu.memory_space<vmem>>, vector<1x32xf32>
    %c0_21 = arith.constant 0 : index
    %c0_22 = arith.constant 0 : index
    %16 = vector.load %arg3[%c0_21, %c0_22] : memref<2x32xf32, #tpu.memory_space<vmem>>, vector<1x32xf32>
    %c1_23 = arith.constant 1 : index
    %c0_24 = arith.constant 0 : index
    %17 = vector.load %arg3[%c1_23, %c0_24] : memref<2x32xf32, #tpu.memory_space<vmem>>, vector<1x32xf32>
    %cst_25 = arith.constant 0.000000e+00 : f32
    %18 = vector.broadcast %cst_25 : f32 to vector<1x96xf32>
    %c0_i32 = arith.constant 0 : i32
    %c8_i32 = arith.constant 8 : i32
    %19 = arith.addi %c0_i32, %c8_i32 : i32
    %c1_i32 = arith.constant 1 : i32
    %20:4 = scf.for %arg14 = %c0_i32 to %19 step %c1_i32 iter_args(%arg15 = %14, %arg16 = %15, %arg17 = %16, %arg18 = %17) -> (vector<1x32xf32>, vector<1x32xf32>, vector<1x32xf32>, vector<1x32xf32>)  : i32 {
      %25 = arith.index_cast %arg14 : i32 to index
      %c0_35 = arith.constant 0 : index
      %26 = vector.load %arg13[%25, %c0_35] : memref<8x128xf32, #tpu.memory_space<vmem>>, vector<1x128xf32>
      %cst_36 = arith.constant dense<0.000000e+00> : vector<1x128xf32>
      %27 = tpu.matmul %arg15, %11, %cst_36 {dimension_numbers = #tpu.dot_dimension_numbers<[1], [0], [0], [1], [0, 0, 1, 1], [], []>} : vector<1x32xf32>, vector<32x128xf32>, vector<1x128xf32> -> vector<1x128xf32>
      %28 = arith.addf %26, %27 : vector<1x128xf32>
      %29 = vector.extract_strided_slice %28 {offsets = [0, 0], sizes = [1, 96], strides = [1, 1]} : vector<1x128xf32> to vector<1x96xf32>
      %30 = arith.negf %29 : vector<1x96xf32>
      %31 = math.exp %30 : vector<1x96xf32>
      %cst_37 = arith.constant 1.000000e+00 : f32
      %32 = vector.broadcast %cst_37 : f32 to vector<1x96xf32>
      %33 = arith.addf %32, %31 : vector<1x96xf32>
      %34 = arith.divf %32, %33 : vector<1x96xf32>
      %35 = vector.extract_strided_slice %34 {offsets = [0, 0], sizes = [1, 32], strides = [1, 1]} : vector<1x96xf32> to vector<1x32xf32>
      %36 = vector.extract_strided_slice %34 {offsets = [0, 32], sizes = [1, 32], strides = [1, 1]} : vector<1x96xf32> to vector<1x32xf32>
      %37 = vector.extract_strided_slice %34 {offsets = [0, 64], sizes = [1, 32], strides = [1, 1]} : vector<1x96xf32> to vector<1x32xf32>
      %38 = vector.extract_strided_slice %28 {offsets = [0, 96], sizes = [1, 32], strides = [1, 1]} : vector<1x128xf32> to vector<1x32xf32>
      %39 = math.tanh %38 : vector<1x32xf32>
      %40 = arith.mulf %36, %arg17 : vector<1x32xf32>
      %41 = arith.mulf %35, %39 : vector<1x32xf32>
      %42 = arith.addf %40, %41 : vector<1x32xf32>
      %43 = math.tanh %42 : vector<1x32xf32>
      %44 = arith.mulf %37, %43 : vector<1x32xf32>
      %45 = tpu.concatenate %44, %arg16 in 1 : vector<1x32xf32>, vector<1x32xf32> -> vector<1x64xf32>
      %cst_38 = arith.constant dense<0.000000e+00> : vector<1x128xf32>
      %46 = tpu.matmul %45, %12, %cst_38 {dimension_numbers = #tpu.dot_dimension_numbers<[1], [0], [0], [1], [0, 0, 1, 1], [], []>} : vector<1x64xf32>, vector<64x128xf32>, vector<1x128xf32> -> vector<1x128xf32>
      %47 = arith.addf %46, %13 : vector<1x128xf32>
      %48 = vector.extract_strided_slice %47 {offsets = [0, 0], sizes = [1, 96], strides = [1, 1]} : vector<1x128xf32> to vector<1x96xf32>
      %49 = arith.negf %48 : vector<1x96xf32>
      %50 = math.exp %49 : vector<1x96xf32>
      %cst_39 = arith.constant 1.000000e+00 : f32
      %51 = vector.broadcast %cst_39 : f32 to vector<1x96xf32>
      %52 = arith.addf %51, %50 : vector<1x96xf32>
      %53 = arith.divf %51, %52 : vector<1x96xf32>
      %54 = vector.extract_strided_slice %53 {offsets = [0, 0], sizes = [1, 32], strides = [1, 1]} : vector<1x96xf32> to vector<1x32xf32>
      %55 = vector.extract_strided_slice %53 {offsets = [0, 32], sizes = [1, 32], strides = [1, 1]} : vector<1x96xf32> to vector<1x32xf32>
      %56 = vector.extract_strided_slice %53 {offsets = [0, 64], sizes = [1, 32], strides = [1, 1]} : vector<1x96xf32> to vector<1x32xf32>
      %57 = vector.extract_strided_slice %47 {offsets = [0, 96], sizes = [1, 32], strides = [1, 1]} : vector<1x128xf32> to vector<1x32xf32>
      %58 = math.tanh %57 : vector<1x32xf32>
      %59 = arith.mulf %55, %arg18 : vector<1x32xf32>
      %60 = arith.mulf %54, %58 : vector<1x32xf32>
      %61 = arith.addf %59, %60 : vector<1x32xf32>
      %62 = math.tanh %61 : vector<1x32xf32>
      %63 = arith.mulf %56, %62 : vector<1x32xf32>
      %64 = tpu.concatenate %63, %18 in 1 : vector<1x32xf32>, vector<1x96xf32> -> vector<1x128xf32>
      %65 = arith.index_cast %arg14 : i32 to index
      %c0_40 = arith.constant 0 : index
      %66 = vector.load %arg10[%65, %c0_40] : memref<8x128xf32, #tpu.memory_space<vmem>>, vector<1x128xf32>
      tpu.vector_store %arg10[%65, %c0_40], %64 {strides = array<i32>} : memref<8x128xf32, #tpu.memory_space<vmem>>, vector<1x128xf32>,
      scf.yield %44, %63, %42, %61 : vector<1x32xf32>, vector<1x32xf32>, vector<1x32xf32>, vector<1x32xf32>
    }
    %c8_i32_26 = arith.constant 8 : i32
    %c0_27 = arith.constant 0 : index
    %c0_28 = arith.constant 0 : index
    %21 = vector.load %arg11[%c0_27, %c0_28] : memref<2x32xf32, #tpu.memory_space<vmem>>, vector<1x32xf32>
    tpu.vector_store %arg11[%c0_27, %c0_28], %20#0 {strides = array<i32>} : memref<2x32xf32, #tpu.memory_space<vmem>>, vector<1x32xf32>,
    %c0_29 = arith.constant 0 : index
    %c0_30 = arith.constant 0 : index
    %22 = vector.load %arg12[%c0_29, %c0_30] : memref<2x32xf32, #tpu.memory_space<vmem>>, vector<1x32xf32>
    tpu.vector_store %arg12[%c0_29, %c0_30], %20#2 {strides = array<i32>} : memref<2x32xf32, #tpu.memory_space<vmem>>, vector<1x32xf32>,
    %c1_31 = arith.constant 1 : index
    %c0_32 = arith.constant 0 : index
    %23 = vector.load %arg11[%c1_31, %c0_32] : memref<2x32xf32, #tpu.memory_space<vmem>>, vector<1x32xf32>
    tpu.vector_store %arg11[%c1_31, %c0_32], %20#1 {strides = array<i32>} : memref<2x32xf32, #tpu.memory_space<vmem>>, vector<1x32xf32>,
    %c1_33 = arith.constant 1 : index
    %c0_34 = arith.constant 0 : index
    %24 = vector.load %arg12[%c1_33, %c0_34] : memref<2x32xf32, #tpu.memory_space<vmem>>, vector<1x32xf32>
    tpu.vector_store %arg12[%c1_33, %c0_34], %20#3 {strides = array<i32>} : memref<2x32xf32, #tpu.memory_space<vmem>>, vector<1x32xf32>,
    return
  }
}

</mosaic_0001>

<llo_original>
// kernel: tpu_custom_call.1
$region0: #{tpu_custom_call.1}
  #allocation0 [shape = 'u32[]', space=smem, size = 0x4, offset = 0x4, fixed_abs, tag = 'smem constant byte address 0x4 - core index']
  #allocation1 [shape = 'u32[144,128]{1,0:T(1,128)}', space=vmem, size = 0x12000, scoped, tag = 'internal scratch']
  #allocation2 [shape = 'f32[8,128]{1,0:T(8,128)}', space=vmem, size = 0x1000, scoped, tag = 'scratch operand']
  %s0 = inlined_call_operand.hbm [shape: f32[8,8], index: 0, kind: input, shape index: {}]
  %s1 = inlined_call_operand.hbm [shape: f32[8,32], index: 1, kind: input, shape index: {}]
  %s2 = inlined_call_operand.vmem [shape: f32[2,32], index: 2, kind: input, shape index: {}]
  %s3 = inlined_call_operand.vmem [shape: f32[2,32], index: 3, kind: input, shape index: {}]
  %s4 = inlined_call_operand.vmem [shape: f32[8,128], index: 4, kind: input, shape index: {}]
  %s5 = inlined_call_operand.hbm [shape: f32[32,128], index: 5, kind: input, shape index: {}]
  %s6 = inlined_call_operand.hbm [shape: f32[32,128], index: 6, kind: input, shape index: {}]
  %s7 = inlined_call_operand.vmem [shape: f32[1,128], index: 7, kind: input, shape index: {}]
  %s8 = inlined_call_operand.hbm [shape: f32[64,128], index: 8, kind: input, shape index: {}]
  %s9 = inlined_call_operand.vmem [shape: f32[1,128], index: 9, kind: input, shape index: {}]
  %s10 = inlined_call_operand.hbm [shape: f32[8,128], index: 10, kind: output, shape index: {0}]
  %s11 = inlined_call_operand.hbm [shape: f32[2,32], index: 11, kind: output, shape index: {1}]
  %s12 = inlined_call_operand.hbm [shape: f32[2,32], index: 12, kind: output, shape index: {2}]
  %13 = xla_tuple %s10, %s11, %s12
  %s14 = sld [smem:[#allocation0]]
  $region93: #{tpu_custom_call.1} parent=0
    _
  %s16 = ssub.s32 1, %s14
  %s17 = scalar_select 0, %s16, %s14
  $region1: #{tpu_custom_call.1} parent=0
    #allocation3 [shape = 'u8[4096]{0}', space=vmem, size = 0x1000, scoped, tag = 'input window, operand 0, single buffered']
    #allocation4 [shape = 's32[1]{0}', space=sflag, size = 0x4, scoped, tag = 'scoped memory for tpu_custom_call.1']
    #allocation5 [shape = 's32[1]{0}', space=sflag, size = 0x4, scoped, tag = 'scoped memory for tpu_custom_call.1']
    #allocation6 [shape = 'u8[4096]{0}', space=vmem, size = 0x1000, scoped, tag = 'input window, operand 1, single buffered']
    #allocation7 [shape = 's32[1]{0}', space=sflag, size = 0x4, scoped, tag = 'scoped memory for tpu_custom_call.1']
    #allocation8 [shape = 'u8[16384]{0}', space=vmem, size = 0x4000, scoped, tag = 'input window, operand 5, single buffered']
    #allocation9 [shape = 'u8[16384]{0}', space=vmem, size = 0x4000, scoped, tag = 'input window, operand 6, single buffered']
    #allocation10 [shape = 's32[1]{0}', space=sflag, size = 0x4, scoped, tag = 'scoped memory for tpu_custom_call.1']
    #allocation11 [shape = 'u8[32768]{0}', space=vmem, size = 0x8000, scoped, tag = 'input window, operand 8, single buffered']
    #allocation12 [shape = 'u8[4096]{0}', space=vmem, size = 0x1000, scoped, tag = 'output window, operand 0, single buffered']
    #allocation13 [shape = 'u8[1024]{0}', space=vmem, size = 0x400, scoped, tag = 'output window, operand 1, single buffered']
    #allocation14 [shape = 's32[1]{0}', space=sflag, size = 0x4, scoped, tag = 'scoped memory for tpu_custom_call.1']
    #allocation15 [shape = 'u8[1024]{0}', space=vmem, size = 0x400, scoped, tag = 'output window, operand 2, single buffered']
    %18 = vsyncpa [#allocation4], 0
    %19 = vsyncpa [#allocation7], 0
    %20 = vsyncpa [#allocation10], 0
    %21 = vsyncpa [#allocation5], 0
    %22 = vsyncpa [#allocation14], 0
    // Predicated region
    $region2: #{tpu_custom_call.1} parent=1 // pred_check
      _
    $region3: #{tpu_custom_call.1} parent=1 // pred_check_branch
      %24 = sbr.rel (0) target = $region5
    $region4: #{tpu_custom_call.1} parent=1 // pred_region
      %s26 = ssub.s32 128, 128
      %27 = vsyncadd [#allocation4], %s26
      %s29 = sshll.u32 [#allocation3], 4
      %s30 = int_to_ptr.vmem [resolvable:$true] %s29
      %32 = dma.hbm_to_vmem [thread:$0]  %s0, 128, %s30, [#allocation4]
    $region5: #{tpu_custom_call.1} parent=1 // pred_fallthru
      _
    // Predicated region
    $region6: #{tpu_custom_call.1} parent=1 // pred_check
      _
    $region7: #{tpu_custom_call.1} parent=1 // pred_check_branch
      %34 = sbr.rel (0) target = $region9
    $region8: #{tpu_custom_call.1} parent=1 // pred_region
      %s36 = ssub.s32 128, 128
      %37 = vsyncadd [#allocation7], %s36
      %s39 = sshll.u32 [#allocation6], 4
      %s40 = int_to_ptr.vmem [resolvable:$true] %s39
      %42 = dma.hbm_to_vmem [thread:$0]  %s1, 128, %s40, [#allocation7]
    $region9: #{tpu_custom_call.1} parent=1 // pred_fallthru
      _
    // Predicated region
    $region10: #{tpu_custom_call.1} parent=1 // pred_check
      _
    $region11: #{tpu_custom_call.1} parent=1 // pred_check_branch
      %44 = sbr.rel (0) target = $region13
    $region12: #{tpu_custom_call.1} parent=1 // pred_region
      _
    $region13: #{tpu_custom_call.1} parent=1 // pred_fallthru
      _
    // Predicated region
    $region14: #{tpu_custom_call.1} parent=1 // pred_check
      _
    $region15: #{tpu_custom_call.1} parent=1 // pred_check_branch
      %46 = sbr.rel (0) target = $region17
    $region16: #{tpu_custom_call.1} parent=1 // pred_region
      _
    $region17: #{tpu_custom_call.1} parent=1 // pred_fallthru
      _
    // Predicated region
    $region18: #{tpu_custom_call.1} parent=1 // pred_check
      _
    $region19: #{tpu_custom_call.1} parent=1 // pred_check_branch
      %48 = sbr.rel (0) target = $region21
    $region20: #{tpu_custom_call.1} parent=1 // pred_region
      _
    $region21: #{tpu_custom_call.1} parent=1 // pred_fallthru
      _
    // Predicated region
    $region22: #{tpu_custom_call.1} parent=1 // pred_check
      _
    $region23: #{tpu_custom_call.1} parent=1 // pred_check_branch
      %50 = sbr.rel (0) target = $region25
    $region24: #{tpu_custom_call.1} parent=1 // pred_region
      %s52 = ssub.s32 512, 512
      %53 = vsyncadd [#allocation7], %s52
      %s54 = sshll.u32 [#allocation8], 4
      %s55 = int_to_ptr.vmem [resolvable:$true] %s54
      %60 = dma.hbm_to_vmem [thread:$0]  %s5, 512, %s55, [#allocation7], 128, 128, 8
    $region25: #{tpu_custom_call.1} parent=1 // pred_fallthru
      _
    // Predicated region
    $region26: #{tpu_custom_call.1} parent=1 // pred_check
      _
    $region27: #{tpu_custom_call.1} parent=1 // pred_check_branch
      %62 = sbr.rel (0) target = $region29
    $region28: #{tpu_custom_call.1} parent=1 // pred_region
      %s64 = ssub.s32 512, 512
      %65 = vsyncadd [#allocation10], %s64
      %s66 = sshll.u32 [#allocation9], 4
      %s67 = int_to_ptr.vmem [resolvable:$true] %s66
      %72 = dma.hbm_to_vmem [thread:$0]  %s6, 512, %s67, [#allocation10], 128, 128, 8
    $region29: #{tpu_custom_call.1} parent=1 // pred_fallthru
      _
    // Predicated region
    $region30: #{tpu_custom_call.1} parent=1 // pred_check
      _
    $region31: #{tpu_custom_call.1} parent=1 // pred_check_branch
      %74 = sbr.rel (0) target = $region33
    $region32: #{tpu_custom_call.1} parent=1 // pred_region
      _
    $region33: #{tpu_custom_call.1} parent=1 // pred_fallthru
      _
    // Predicated region
    $region34: #{tpu_custom_call.1} parent=1 // pred_check
      _
    $region35: #{tpu_custom_call.1} parent=1 // pred_check_branch
      %76 = sbr.rel (0) target = $region37
    $region36: #{tpu_custom_call.1} parent=1 // pred_region
      %s78 = ssub.s32 1024, 1024
      %79 = vsyncadd [#allocation10], %s78
      %s80 = sshll.u32 [#allocation11], 4
      %s81 = int_to_ptr.vmem [resolvable:$true] %s80
      %86 = dma.hbm_to_vmem [thread:$0]  %s8, 1024, %s81, [#allocation10], 128, 128, 8
    $region37: #{tpu_custom_call.1} parent=1 // pred_fallthru
      _
    // Predicated region
    $region38: #{tpu_custom_call.1} parent=1 // pred_check
      _
    $region39: #{tpu_custom_call.1} parent=1 // pred_check_branch
      %88 = sbr.rel (0) target = $region41
    $region40: #{tpu_custom_call.1} parent=1 // pred_region
      _
    $region41: #{tpu_custom_call.1} parent=1 // pred_fallthru
      _
    // Predicated region
    $region42: #{tpu_custom_call.1} parent=1 // pred_check
      _
    $region43: #{tpu_custom_call.1} parent=1 // pred_check_branch
      %90 = sbr.rel (0) target = $region45
    $region44: #{tpu_custom_call.1} parent=1 // pred_region
      %91 = dma.done [#allocation4], 128
    $region45: #{tpu_custom_call.1} parent=1 // pred_fallthru
      _
    // Predicated region
    $region46: #{tpu_custom_call.1} parent=1 // pred_check
      _
    $region47: #{tpu_custom_call.1} parent=1 // pred_check_branch
      %93 = sbr.rel (0) target = $region49
    $region48: #{tpu_custom_call.1} parent=1 // pred_region
      %94 = dma.done [#allocation7], 128
    $region49: #{tpu_custom_call.1} parent=1 // pred_fallthru
      _
    // Predicated region
    $region50: #{tpu_custom_call.1} parent=1 // pred_check
      _
    $region51: #{tpu_custom_call.1} parent=1 // pred_check_branch
      %96 = sbr.rel (0) target = $region53
    $region52: #{tpu_custom_call.1} parent=1 // pred_region
      %97 = dma.done [#allocation7], 512
    $region53: #{tpu_custom_call.1} parent=1 // pred_fallthru
      _
    // Predicated region
    $region54: #{tpu_custom_call.1} parent=1 // pred_check
      _
    $region55: #{tpu_custom_call.1} parent=1 // pred_check_branch
      %99 = sbr.rel (0) target = $region57
    $region56: #{tpu_custom_call.1} parent=1 // pred_region
      %100 = dma.done [#allocation10], 512
    $region57: #{tpu_custom_call.1} parent=1 // pred_fallthru
      _
    // Predicated region
    $region58: #{tpu_custom_call.1} parent=1 // pred_check
      _
    $region59: #{tpu_custom_call.1} parent=1 // pred_check_branch
      %102 = sbr.rel (0) target = $region61
    $region60: #{tpu_custom_call.1} parent=1 // pred_region
      %103 = dma.done [#allocation10], 1024
    $region61: #{tpu_custom_call.1} parent=1 // pred_fallthru
      _
    %v104 = vld [vmem:[#allocation3] sm:$0xff]
    %v105 = vld [vmem:[#allocation6] sm:$0xff]
    %v106 = vld [vmem:[%s4] sm:$0xff]
    %v107 = vld [vmem:[#allocation8] sm:$0xff]
    %v108 = vld [vmem:[#allocation8 + $0x8] sm:$0xff]
    %v109 = vld [vmem:[#allocation8 + $0x10] sm:$0xff]
    %v110 = vld [vmem:[#allocation8 + $0x18] sm:$0xff]
    %vm111 = vcmask 261120
    %v113 = vsel %vm111, %v105, 0
    %115 = vmatprep.subr.mxu0 0.0
    %116 = vmatpush1.msra.mxu0 %v107
    %117 = vmatprep.subr.mxu0 0.0
    %118 = vmatpush1.msra.mxu0 %v108
    %119 = vmatprep.subr.mxu0 0.0
    %120 = vmatpush1.msra.mxu0 %v109
    %121 = vmatprep.subr.mxu0 0.0
    %122 = vmatpush1.msra.mxu0 %v110
    %123 = vmatprep.subr.mxu0 0.0
    %124 = vmatpush1.msra.mxu0 0.0
    %125 = vmatprep.subr.mxu0 0.0
    %126 = vmatpush1.msra.mxu0 0.0
    %127 = vmatprep.subr.mxu0 0.0
    %128 = vmatpush1.msra.mxu0 0.0
    %129 = vmatprep.subr.mxu0 0.0
    %130 = vmatpush1.msra.mxu0 0.0
    %131 = vmatprep.subr.mxu0 0.0
    %132 = vmatpush1.msra.mxu0 0.0
    %133 = vmatprep.subr.mxu0 0.0
    %134 = vmatpush1.msra.mxu0 0.0
    %135 = vmatprep.subr.mxu0 0.0
    %136 = vmatpush1.msra.mxu0 0.0
    %137 = vmatprep.subr.mxu0 0.0
    %138 = vmatpush1.msra.mxu0 0.0
    %139 = vmatprep.subr.mxu0 0.0
    %140 = vmatpush1.msra.mxu0 0.0
    %141 = vmatprep.subr.mxu0 0.0
    %142 = vmatpush1.msra.mxu0 0.0
    %143 = vmatprep.subr.mxu0 0.0
    %144 = vmatpush1.msra.mxu0 0.0
    %145 = vmatprep.subr.mxu0 0.0
    %146 = vmatpush1.msra.mxu0 0.0
    %147 = vmatprep.subr.mxu0 0.0
    %148 = vmatpush1.msra.mxu0 0.0
    %149 = vmatprep.subr.mxu0 0.0
    %150 = vmatpush1.msra.mxu0 0.0
    %151 = vmatprep.subr.mxu0 0.0
    %152 = vmatpush1.msra.mxu0 0.0
    %153 = vmatprep.subr.mxu0 0.0
    %154 = vmatpush1.msra.mxu0 0.0
    %155 = vmatprep.subr.mxu0 0.0
    %156 = vmatpush1.msra.mxu0 0.0
    %157 = vmatprep.subr.mxu0 0.0
    %158 = vmatpush1.msra.mxu0 0.0
    %159 = vmatprep.subr.mxu0 0.0
    %160 = vmatpush1.msra.mxu0 0.0
    %161 = vmatprep.subr.mxu0 0.0
    %162 = vmatpush1.msra.mxu0 0.0
    %163 = vmatprep.subr.mxu0 0.0
    %164 = vmatpush1.msra.mxu0 0.0
    %165 = vmatprep.subr.mxu0 0.0
    %166 = vmatpush1.msra.mxu0 0.0
    %167 = vmatprep.subr.mxu0 0.0
    %168 = vmatpush1.msra.mxu0 0.0
    %169 = vmatprep.subr.mxu0 0.0
    %170 = vmatpush1.msra.mxu0 0.0
    %171 = vmatprep.subr.mxu0 0.0
    %172 = vmatpush1.msra.mxu0 0.0
    %173 = vmatprep.subr.mxu0 0.0
    %174 = vmatpush1.msra.mxu0 0.0
    %175 = vmatprep.subr.mxu0 0.0
    %176 = vmatpush1.msra.mxu0 0.0
    %177 = vmatprep.subr.mxu0 0.0
    %178 = vmatpush1.msra.mxu0 0.0
    %179 = vmatprep.mubr.f32.mxu0 0.0
    %180 = vmatmul.mubr.f32.gmra.mrb[0].mxu0 %v113
    %v181 = vpop.f32.mrb[0].mxu0
    %v182 = vadd.f32 0.0, %v181
    %v183 = vpop.f32.mrb[0].mxu0
    %184 = vdwg.mxu0
    %vm185 = vcmask 64512
    %v187 = vsel %vm185, %v104, 0
    %189 = vmatprep.subr.mxu0 0.0
    %190 = vmatpush1.msra.mxu0 %v106
    %191 = vmatprep.subr.mxu0 0.0
    %192 = vmatpush1.msra.mxu0 0.0
    %193 = vmatprep.subr.mxu0 0.0
    %194 = vmatpush1.msra.mxu0 0.0
    %195 = vmatprep.subr.mxu0 0.0
    %196 = vmatpush1.msra.mxu0 0.0
    %197 = vmatprep.subr.mxu0 0.0
    %198 = vmatpush1.msra.mxu0 0.0
    %199 = vmatprep.subr.mxu0 0.0
    %200 = vmatpush1.msra.mxu0 0.0
    %201 = vmatprep.subr.mxu0 0.0
    %202 = vmatpush1.msra.mxu0 0.0
    %203 = vmatprep.subr.mxu0 0.0
    %204 = vmatpush1.msra.mxu0 0.0
    %205 = vmatprep.subr.mxu0 0.0
    %206 = vmatpush1.msra.mxu0 0.0
    %207 = vmatprep.subr.mxu0 0.0
    %208 = vmatpush1.msra.mxu0 0.0
    %209 = vmatprep.subr.mxu0 0.0
    %210 = vmatpush1.msra.mxu0 0.0
    %211 = vmatprep.subr.mxu0 0.0
    %212 = vmatpush1.msra.mxu0 0.0
    %213 = vmatprep.subr.mxu0 0.0
    %214 = vmatpush1.msra.mxu0 0.0
    %215 = vmatprep.subr.mxu0 0.0
    %216 = vmatpush1.msra.mxu0 0.0
    %217 = vmatprep.subr.mxu0 0.0
    %218 = vmatpush1.msra.mxu0 0.0
    %219 = vmatprep.subr.mxu0 0.0
    %220 = vmatpush1.msra.mxu0 0.0
    %221 = vmatprep.subr.mxu0 0.0
    %222 = vmatpush1.msra.mxu0 0.0
    %223 = vmatprep.subr.mxu0 0.0
    %224 = vmatpush1.msra.mxu0 0.0
    %225 = vmatprep.subr.mxu0 0.0
    %226 = vmatpush1.msra.mxu0 0.0
    %227 = vmatprep.subr.mxu0 0.0
    %228 = vmatpush1.msra.mxu0 0.0
    %229 = vmatprep.subr.mxu0 0.0
    %230 = vmatpush1.msra.mxu0 0.0
    %231 = vmatprep.subr.mxu0 0.0
    %232 = vmatpush1.msra.mxu0 0.0
    %233 = vmatprep.subr.mxu0 0.0
    %234 = vmatpush1.msra.mxu0 0.0
    %235 = vmatprep.subr.mxu0 0.0
    %236 = vmatpush1.msra.mxu0 0.0
    %237 = vmatprep.subr.mxu0 0.0
    %238 = vmatpush1.msra.mxu0 0.0
    %239 = vmatprep.subr.mxu0 0.0
    %240 = vmatpush1.msra.mxu0 0.0
    %241 = vmatprep.subr.mxu0 0.0
    %242 = vmatpush1.msra.mxu0 0.0
    %243 = vmatprep.subr.mxu0 0.0
    %244 = vmatpush1.msra.mxu0 0.0
    %245 = vmatprep.subr.mxu0 0.0
    %246 = vmatpush1.msra.mxu0 0.0
    %247 = vmatprep.subr.mxu0 0.0
    %248 = vmatpush1.msra.mxu0 0.0
    %249 = vmatprep.subr.mxu0 0.0
    %250 = vmatpush1.msra.mxu0 0.0
    %251 = vmatprep.subr.mxu0 0.0
    %252 = vmatpush1.msra.mxu0 0.0
    %253 = vmatprep.mubr.f32.mxu0 0.0
    %254 = vmatmul.mubr.f32.gmra.mrb[0].mxu0 %v187
    %v255 = vpop.f32.mrb[0].mxu0
    %v256 = vadd.f32 %v182, %v255
    %v257 = vpop.f32.mrb[0].mxu0
    %258 = vdwg.mxu0
    %v259 = vld [vmem:[%s7] sm:$0x1]
    %v261 = vlaneseq
    %v262 = vshrl.u32 %v261, 7
    %v263 = vsub.s32 0, %v262
    %v264 = vrot.slane %v259, %v263
    %v266 = vadd.f32 %v256, %v264
    %267 = vst [vmem:[#allocation2] sm:$0xff] %v266
    %v268 = vld [vmem:[#allocation9] sm:$0xff]
    %v269 = vld [vmem:[#allocation9 + $0x8] sm:$0xff]
    %v270 = vld [vmem:[#allocation9 + $0x10] sm:$0xff]
    %v271 = vld [vmem:[#allocation9 + $0x18] sm:$0xff]
    %v272 = vld [vmem:[#allocation11] sm:$0xff]
    %v273 = vld [vmem:[#allocation11 + $0x8] sm:$0xff]
    %v274 = vld [vmem:[#allocation11 + $0x10] sm:$0xff]
    %v275 = vld [vmem:[#allocation11 + $0x18] sm:$0xff]
    %v276 = vld [vmem:[#allocation11 + $0x20] sm:$0xff]
    %v277 = vld [vmem:[#allocation11 + $0x28] sm:$0xff]
    %v278 = vld [vmem:[#allocation11 + $0x30] sm:$0xff]
    %v279 = vld [vmem:[#allocation11 + $0x38] sm:$0xff]
    %v280 = vld [vmem:[%s9] sm:$0x1]
    %v281 = vld [vmem:[%s2] sm:$0x1]
    %v282 = vld [vmem:[%s2 + $0x1] sm:$0x1]
    %v283 = vld [vmem:[%s3] sm:$0x1]
    %v284 = vld [vmem:[%s3 + $0x1] sm:$0x1]
    loop: start=0, step=1, limit=8
    $region62: #{tpu_custom_call.1} parent=1 // loop_pre_header
      _
    $region63: #{tpu_custom_call.1} parent=1 // loop_header
      %s286 = sphi 0, %s290
      %p287 = scmp.ge.s32.totalorder %s286, 8
      %v291 = vphi %v281, %v401
      %v292 = vphi %v282, %v512
      %v293 = vphi %v283, %v519
      %v294 = vphi %v284, %v523
    $region64: #{tpu_custom_call.1} parent=1 // loop_header_branch
      %289 = sbr.rel (%p287) target = $region68
    $region65: #{tpu_custom_call.1} parent=1 // loop_body
      %s295 = scalar_lea.vmem [#allocation2], %s286
      %v296 = vld [vmem:[%s295] sm:$0x1]
      %v298 = vsel %vm111, %v291, 0
      %300 = vmatprep.subr.mxu0 0.0
      %301 = vmatpush1.msra.mxu0 %v268
      %302 = vmatprep.subr.mxu0 0.0
      %303 = vmatpush1.msra.mxu0 %v269
      %304 = vmatprep.subr.mxu0 0.0
      %305 = vmatpush1.msra.mxu0 %v270
      %306 = vmatprep.subr.mxu0 0.0
      %307 = vmatpush1.msra.mxu0 %v271
      %308 = vmatprep.subr.mxu0 0.0
      %309 = vmatpush1.msra.mxu0 0.0
      %310 = vmatprep.subr.mxu0 0.0
      %311 = vmatpush1.msra.mxu0 0.0
      %312 = vmatprep.subr.mxu0 0.0
      %313 = vmatpush1.msra.mxu0 0.0
      %314 = vmatprep.subr.mxu0 0.0
      %315 = vmatpush1.msra.mxu0 0.0
      %316 = vmatprep.subr.mxu0 0.0
      %317 = vmatpush1.msra.mxu0 0.0
      %318 = vmatprep.subr.mxu0 0.0
      %319 = vmatpush1.msra.mxu0 0.0
      %320 = vmatprep.subr.mxu0 0.0
      %321 = vmatpush1.msra.mxu0 0.0
      %322 = vmatprep.subr.mxu0 0.0
      %323 = vmatpush1.msra.mxu0 0.0
      %324 = vmatprep.subr.mxu0 0.0
      %325 = vmatpush1.msra.mxu0 0.0
      %326 = vmatprep.subr.mxu0 0.0
      %327 = vmatpush1.msra.mxu0 0.0
      %328 = vmatprep.subr.mxu0 0.0
      %329 = vmatpush1.msra.mxu0 0.0
      %330 = vmatprep.subr.mxu0 0.0
      %331 = vmatpush1.msra.mxu0 0.0
      %332 = vmatprep.subr.mxu0 0.0
      %333 = vmatpush1.msra.mxu0 0.0
      %334 = vmatprep.subr.mxu0 0.0
      %335 = vmatpush1.msra.mxu0 0.0
      %336 = vmatprep.subr.mxu0 0.0
      %337 = vmatpush1.msra.mxu0 0.0
      %338 = vmatprep.subr.mxu0 0.0
      %339 = vmatpush1.msra.mxu0 0.0
      %340 = vmatprep.subr.mxu0 0.0
      %341 = vmatpush1.msra.mxu0 0.0
      %342 = vmatprep.subr.mxu0 0.0
      %343 = vmatpush1.msra.mxu0 0.0
      %344 = vmatprep.subr.mxu0 0.0
      %345 = vmatpush1.msra.mxu0 0.0
      %346 = vmatprep.subr.mxu0 0.0
      %347 = vmatpush1.msra.mxu0 0.0
      %348 = vmatprep.subr.mxu0 0.0
      %349 = vmatpush1.msra.mxu0 0.0
      %350 = vmatprep.subr.mxu0 0.0
      %351 = vmatpush1.msra.mxu0 0.0
      %352 = vmatprep.subr.mxu0 0.0
      %353 = vmatpush1.msra.mxu0 0.0
      %354 = vmatprep.subr.mxu0 0.0
      %355 = vmatpush1.msra.mxu0 0.0
      %356 = vmatprep.subr.mxu0 0.0
      %357 = vmatpush1.msra.mxu0 0.0
      %358 = vmatprep.subr.mxu0 0.0
      %359 = vmatpush1.msra.mxu0 0.0
      %360 = vmatprep.subr.mxu0 0.0
      %361 = vmatpush1.msra.mxu0 0.0
      %362 = vmatprep.subr.mxu0 0.0
      %363 = vmatpush1.msra.mxu0 0.0
      %364 = vmatprep.mubr.f32.mxu0 0.0
      %365 = vmatmul.mubr.f32.gmra.mrb[0].mxu0 %v298
      %v366 = vpop.f32.mrb[0].mxu0
      %v367 = vadd.f32 0.0, %v366
      %v368 = vpop.f32.mrb[0].mxu0
      %369 = vdwg.mxu0
      %v370 = vadd.f32 %v296, %v367
      %v371 = vxor.u32 %v370, 2147483648
      %v372 = vmul.f32 %v371, 1.442695
      %v373 = vpow.pop %v372
      %v374 = vadd.f32 %v373, 1.0
      %v375 = vrcp.pop %v374
      %v376 = vmul.f32 1.0, %v375
      %v377 = vtanh.pop %v370
      %379 = vrot.lane.b32.xlu0 %v293, 32
      %v380 = vpop.permute.xlu0 %379
      %v382 = vmul.f32 %v376, %v380
      %384 = vrot.lane.b32.xlu0 %v377, 32
      %v385 = vpop.permute.xlu0 %384
      %v387 = vmul.f32 %v376, %v385
      %389 = vrot.lane.b32.xlu0 %v387, 32
      %v390 = vpop.permute.xlu0 %389
      %v392 = vadd.f32 %v382, %v390
      %v393 = vtanh.pop %v392
      %395 = vrot.lane.b32.xlu0 %v393, 32
      %v396 = vpop.permute.xlu0 %395
      %v398 = vmul.f32 %v376, %v396
      %400 = vrot.lane.b32.xlu0 %v398, 64
      %v401 = vpop.permute.xlu0 %400
      %404 = vrot.lane.b32.xlu0 %v292, 32
      %v405 = vpop.permute.xlu0 %404
      %v407 = vsel %vm111, %v401, %v405
      %vm408 = vcmask 523264
      %v410 = vsel %vm408, %v407, 0
      %412 = vmatprep.subr.mxu0 0.0
      %413 = vmatpush1.msra.mxu0 %v272
      %414 = vmatprep.subr.mxu0 0.0
      %415 = vmatpush1.msra.mxu0 %v273
      %416 = vmatprep.subr.mxu0 0.0
      %417 = vmatpush1.msra.mxu0 %v274
      %418 = vmatprep.subr.mxu0 0.0
      %419 = vmatpush1.msra.mxu0 %v275
      %420 = vmatprep.subr.mxu0 0.0
      %421 = vmatpush1.msra.mxu0 %v276
      %422 = vmatprep.subr.mxu0 0.0
      %423 = vmatpush1.msra.mxu0 %v277
      %424 = vmatprep.subr.mxu0 0.0
      %425 = vmatpush1.msra.mxu0 %v278
      %426 = vmatprep.subr.mxu0 0.0
      %427 = vmatpush1.msra.mxu0 %v279
      %428 = vmatprep.subr.mxu0 0.0
      %429 = vmatpush1.msra.mxu0 0.0
      %430 = vmatprep.subr.mxu0 0.0
      %431 = vmatpush1.msra.mxu0 0.0
      %432 = vmatprep.subr.mxu0 0.0
      %433 = vmatpush1.msra.mxu0 0.0
      %434 = vmatprep.subr.mxu0 0.0
      %435 = vmatpush1.msra.mxu0 0.0
      %436 = vmatprep.subr.mxu0 0.0
      %437 = vmatpush1.msra.mxu0 0.0
      %438 = vmatprep.subr.mxu0 0.0
      %439 = vmatpush1.msra.mxu0 0.0
      %440 = vmatprep.subr.mxu0 0.0
      %441 = vmatpush1.msra.mxu0 0.0
      %442 = vmatprep.subr.mxu0 0.0
      %443 = vmatpush1.msra.mxu0 0.0
      %444 = vmatprep.subr.mxu0 0.0
      %445 = vmatpush1.msra.mxu0 0.0
      %446 = vmatprep.subr.mxu0 0.0
      %447 = vmatpush1.msra.mxu0 0.0
      %448 = vmatprep.subr.mxu0 0.0
      %449 = vmatpush1.msra.mxu0 0.0
      %450 = vmatprep.subr.mxu0 0.0
      %451 = vmatpush1.msra.mxu0 0.0
      %452 = vmatprep.subr.mxu0 0.0
      %453 = vmatpush1.msra.mxu0 0.0
      %454 = vmatprep.subr.mxu0 0.0
      %455 = vmatpush1.msra.mxu0 0.0
      %456 = vmatprep.subr.mxu0 0.0
      %457 = vmatpush1.msra.mxu0 0.0
      %458 = vmatprep.subr.mxu0 0.0
      %459 = vmatpush1.msra.mxu0 0.0
      %460 = vmatprep.subr.mxu0 0.0
      %461 = vmatpush1.msra.mxu0 0.0
      %462 = vmatprep.subr.mxu0 0.0
      %463 = vmatpush1.msra.mxu0 0.0
      %464 = vmatprep.subr.mxu0 0.0
      %465 = vmatpush1.msra.mxu0 0.0
      %466 = vmatprep.subr.mxu0 0.0
      %467 = vmatpush1.msra.mxu0 0.0
      %468 = vmatprep.subr.mxu0 0.0
      %469 = vmatpush1.msra.mxu0 0.0
      %470 = vmatprep.subr.mxu0 0.0
      %471 = vmatpush1.msra.mxu0 0.0
      %472 = vmatprep.subr.mxu0 0.0
      %473 = vmatpush1.msra.mxu0 0.0
      %474 = vmatprep.subr.mxu0 0.0
      %475 = vmatpush1.msra.mxu0 0.0
      %476 = vmatprep.mubr.f32.mxu0 0.0
      %477 = vmatmul.mubr.f32.gmra.mrb[0].mxu0 %v410
      %v478 = vpop.f32.mrb[0].mxu0
      %v479 = vadd.f32 %v280, %v478
      %v480 = vpop.f32.mrb[0].mxu0
      %481 = vdwg.mxu0
      %v482 = vxor.u32 %v479, 2147483648
      %v483 = vmul.f32 %v482, 1.442695
      %v484 = vpow.pop %v483
      %v485 = vadd.f32 %v484, 1.0
      %v486 = vrcp.pop %v485
      %v487 = vmul.f32 1.0, %v486
      %v488 = vtanh.pop %v479
      %490 = vrot.lane.b32.xlu0 %v294, 32
      %v491 = vpop.permute.xlu0 %490
      %v493 = vmul.f32 %v487, %v491
      %495 = vrot.lane.b32.xlu0 %v488, 32
      %v496 = vpop.permute.xlu0 %495
      %v498 = vmul.f32 %v487, %v496
      %500 = vrot.lane.b32.xlu0 %v498, 32
      %v501 = vpop.permute.xlu0 %500
      %v503 = vadd.f32 %v493, %v501
      %v504 = vtanh.pop %v503
      %506 = vrot.lane.b32.xlu0 %v504, 32
      %v507 = vpop.permute.xlu0 %506
      %v509 = vmul.f32 %v487, %v507
      %511 = vrot.lane.b32.xlu0 %v509, 64
      %v512 = vpop.permute.xlu0 %511
      %v514 = vsel %vm111, %v512, 0.0
      %s515 = scalar_lea.vmem [#allocation12], %s286
      %516 = vst [vmem:[%s515] sm:$0x1] %v514
      %518 = vrot.lane.b32.xlu0 %v392, 96
      %v519 = vpop.permute.xlu0 %518
      %522 = vrot.lane.b32.xlu0 %v503, 96
      %v523 = vpop.permute.xlu0 %522
    $region66: #{tpu_custom_call.1} parent=1 // loop_footer
      %s290 = sadd.s32 1, %s286
    $region67: #{tpu_custom_call.1} parent=1 // loop_footer_branch
      %285 = sbr.rel target = $region63
    $region68: #{tpu_custom_call.1} parent=1 // loop_exit
      _
    %vm525 = vcmask 253952
    %526 = vst.msk [vmem:[#allocation13] sm:$0x1] %vm525, %v291
    %527 = vst.msk [vmem:[#allocation15] sm:$0x1] %vm525, %v293
    %528 = vst.msk [vmem:[#allocation13 + $0x1] sm:$0x1] %vm525, %v292
    %529 = vst.msk [vmem:[#allocation15 + $0x1] sm:$0x1] %vm525, %v294
    // Predicated region
    $region69: #{tpu_custom_call.1} parent=1 // pred_check
      _
    $region70: #{tpu_custom_call.1} parent=1 // pred_check_branch
      %531 = sbr.rel (0) target = $region72
    $region71: #{tpu_custom_call.1} parent=1 // pred_region
      %s533 = ssub.s32 128, 128
      %534 = vsyncadd [#allocation5], %s533
      %s536 = sshll.u32 [#allocation12], 4
      %s537 = int_to_ptr.vmem [resolvable:$true] %s536
      %539 = dma.vmem_to_hbm [thread:$0]  %s537, 128, %s10, [#allocation5]
    $region72: #{tpu_custom_call.1} parent=1 // pred_fallthru
      _
    // Predicated region
    $region73: #{tpu_custom_call.1} parent=1 // pred_check
      _
    $region74: #{tpu_custom_call.1} parent=1 // pred_check_branch
      %541 = sbr.rel (0) target = $region76
    $region75: #{tpu_custom_call.1} parent=1 // pred_region
      %s543 = ssub.s32 32, 32
      %544 = vsyncadd [#allocation14], %s543
      %s546 = sshll.u32 [#allocation13], 4
      %s547 = int_to_ptr.vmem [resolvable:$true] %s546
      %549 = dma.vmem_to_hbm [thread:$0]  %s547, 32, %s11, [#allocation14]
    $region76: #{tpu_custom_call.1} parent=1 // pred_fallthru
      _
    // Predicated region
    $region77: #{tpu_custom_call.1} parent=1 // pred_check
      _
    $region78: #{tpu_custom_call.1} parent=1 // pred_check_branch
      %551 = sbr.rel (0) target = $region80
    $region79: #{tpu_custom_call.1} parent=1 // pred_region
      %s553 = ssub.s32 32, 32
      %554 = vsyncadd [#allocation14], %s553
      %s556 = sshll.u32 [#allocation15], 4
      %s557 = int_to_ptr.vmem [resolvable:$true] %s556
      %559 = dma.vmem_to_hbm [thread:$0]  %s557, 32, %s12, [#allocation14]
    $region80: #{tpu_custom_call.1} parent=1 // pred_fallthru
      _
    // Predicated region
    $region81: #{tpu_custom_call.1} parent=1 // pred_check
      _
    $region82: #{tpu_custom_call.1} parent=1 // pred_check_branch
      %561 = sbr.rel (0) target = $region84
    $region83: #{tpu_custom_call.1} parent=1 // pred_region
      %562 = dma.done [#allocation5], 128
    $region84: #{tpu_custom_call.1} parent=1 // pred_fallthru
      _
    // Predicated region
    $region85: #{tpu_custom_call.1} parent=1 // pred_check
      _
    $region86: #{tpu_custom_call.1} parent=1 // pred_check_branch
      %564 = sbr.rel (0) target = $region88
    $region87: #{tpu_custom_call.1} parent=1 // pred_region
      %565 = dma.done [#allocation14], 32
    $region88: #{tpu_custom_call.1} parent=1 // pred_fallthru
      _
    // Predicated region
    $region89: #{tpu_custom_call.1} parent=1 // pred_check
      _
    $region90: #{tpu_custom_call.1} parent=1 // pred_check_branch
      %567 = sbr.rel (0) target = $region92
    $region91: #{tpu_custom_call.1} parent=1 // pred_region
      %568 = dma.done [#allocation14], 32
    $region92: #{tpu_custom_call.1} parent=1 // pred_fallthru
      _
    %569 = vsyncpa [#allocation4], 1
    %570 = vsyncpa [#allocation7], 1
    %571 = vsyncpa [#allocation10], 1
    %572 = vsyncpa [#allocation5], 1
    %573 = vsyncpa [#allocation14], 1

</llo_original>
